<compile_context>
chip_gen: v6e
topology: v6e:2x2x1
jax: 0.10.0
libtpu: 0.0.40
codegen_flags: <defaults>
</compile_context>

<pallas_src>
import functools

import jax
import jax.numpy as jnp
from jax.experimental import pallas as pl
from jax.experimental.pallas import tpu as pltpu


def _round_up(x, m):
    return (x + m - 1) // m * m


def _policy_eval_kernel(logit_ref, action_ref, alogp_ref, plogp_ref, act_ref):
    """Per batch-tile: action log-prob gather, p*log(p) row sums, greedy argmax.

    Block layout: (TILE_B, A) with actions on the lane axis.  The [B, A]
    probs / log_probs intermediates live only in vregs/VMEM and are never
    written back to HBM.
    """
    logit = logit_ref[...].astype(jnp.float32)              # (TILE_B, A)
    tb, na = logit.shape

    # ---- numerically stable softmax / log_softmax over dim=1 (actions) ----
    m = jnp.max(logit, axis=1, keepdims=True)                # (TILE_B, 1)
    z = logit - m
    e_z = jnp.exp(z)                                         # single EUP pass
    sum_exp = jnp.sum(e_z, axis=1, keepdims=True)            # (TILE_B, 1)
    log_probs = z - jnp.log(sum_exp)                         # (TILE_B, A)
    probs = e_z / sum_exp                                    # reuse e_z; exact divide

    # ---- action_log_probs = log_probs.gather(1, action)  (one-hot trick;
    # deliberately NOT an MXU matmul — A is far below the 128/256 MXU width,
    # the VPU multiply + lane reduce uses otherwise-idle slots) ----
    a = action_ref[...]                                      # (TILE_B, 1) int32
    iota = jax.lax.broadcasted_iota(jnp.int32, (tb, na), 1)  # (TILE_B, A)
    onehot = (iota == a).astype(jnp.float32)
    alogp_ref[...] = jnp.sum(log_probs * onehot, axis=1, keepdims=True)

    # ---- per-row sum(p * log p); the -mean() finalize happens in the JAX
    # wrapper so the batch grid axis stays fully "parallel". ----
    plogp_ref[...] = jnp.sum(probs * log_probs, axis=1, keepdims=True)

    # ---- deterministic select_action: probs.max(1)[1] (first argmax) ----
    is_max = logit == m
    cand = jnp.where(is_max, iota, jnp.int32(na))
    act_ref[...] = jnp.min(cand, axis=1, keepdims=True)


@functools.partial(jax.jit, static_argnames=("tile_b",))
def evaluate_actions_and_select(logit, action, *, tile_b=2048):
    """Policy-head math of OnPolicy.evaluate_actions / select_action.

    Args:
      logit:  [B, A] float — action logits (output of the subclass forward()).
      action: [B, 1] (or [B]) int — taken actions.
      tile_b: rows per grid step (multiple of 8).  Tiles are tiny for small A,
              so pick large values for big batches to amortize per-step overhead.

    Returns:
      action_log_probs: [B, 1] float32   (== log_softmax(logit).gather(1, action))
      entropy:          scalar float32   (== -(p * log p).sum(1).mean())
      greedy_action:    [B, 1] int32     (== softmax(logit).max(1)[1], deterministic path)
    """
    B, A = logit.shape
    action = action.astype(jnp.int32).reshape(B, 1)

    # Batch tiling: pad B up to a multiple of tile_b (tile_b itself a multiple
    # of 8).  Padded rows are zero logits / action 0 — finite, sliced off below.
    tile_b = max(8, min(int(tile_b), _round_up(B, 8)))
    Bp = _round_up(B, tile_b)
    if Bp != B:
        logit = jnp.pad(logit, ((0, Bp - B), (0, 0)))
        action = jnp.pad(action, ((0, Bp - B), (0, 0)))
    num_tiles = Bp // tile_b

    alogp, plogp, act = pl.pallas_call(
        _policy_eval_kernel,
        out_shape=(
            jax.ShapeDtypeStruct((Bp, 1), jnp.float32),   # action_log_probs
            jax.ShapeDtypeStruct((Bp, 1), jnp.float32),   # per-row sum(p*log p)
            jax.ShapeDtypeStruct((Bp, 1), jnp.int32),     # greedy action
        ),
        grid=(num_tiles,),
        in_specs=[
            pl.BlockSpec((tile_b, A), lambda i: (i, 0)),
            pl.BlockSpec((tile_b, 1), lambda i: (i, 0)),
        ],
        out_specs=(
            pl.BlockSpec((tile_b, 1), lambda i: (i, 0)),
            pl.BlockSpec((tile_b, 1), lambda i: (i, 0)),
            pl.BlockSpec((tile_b, 1), lambda i: (i, 0)),
        ),
        # Tiles are tiny (tile_b * A * 4 B, double-buffered) — far below even
        # v5e's 16 MiB default scoped VMEM, so no vmem_limit_bytes override is
        # needed.  "parallel" lets v7x shard the batch grid across its 2 TCs.
        compiler_params=pltpu.CompilerParams(
            dimension_semantics=("parallel",)),
    )(logit, action)

    action_log_probs = alogp[:B]
    greedy_action = act[:B]
    entropy = -jnp.mean(plogp[:B, 0])   # wrapper-side finalize (correct under tiling)
    return action_log_probs, entropy, greedy_action


if __name__ == "__main__":
    B, A = 20, 16        # batch=20 (not a tile multiple -> exercises padding)
    TILE_B = 8           # small tile so the demo exercises a multi-step grid

    key = jax.random.PRNGKey(0)
    k_logit, k_act = jax.random.split(key)
    logit = jax.random.normal(k_logit, (B, A), dtype=jnp.float32)
    action = jax.random.randint(k_act, (B, 1), 0, A, dtype=jnp.int32)

    alogp, entropy, greedy = jax.block_until_ready(
        evaluate_actions_and_select(logit, action, tile_b=TILE_B))

    # Plain-JAX reference check (mirrors the PyTorch semantics).
    ref_logp = jax.nn.log_softmax(logit, axis=1)
    ref_probs = jnp.exp(ref_logp)
    ref_alogp = jnp.take_along_axis(ref_logp, action, axis=1)
    ref_ent = -(ref_probs * ref_logp).sum(1).mean()
    ref_act = jnp.argmax(ref_probs, axis=1)[:, None].astype(jnp.int32)

    assert alogp.shape == (B, 1) and greedy.shape == (B, 1)
    assert jnp.allclose(alogp, ref_alogp, atol=1e-5)
    assert jnp.allclose(entropy, ref_ent, atol=1e-5)
    assert jnp.array_equal(greedy, ref_act)

    print("KERNEL_OK")
</pallas_src>

<mosaic_0001>
module attributes {stable_mosaic.version = 11 : i64} {
  func.func @_policy_eval_kernel(%arg0: i32, %arg1: memref<8x16xf32, #tpu.memory_space<vmem>>, %arg2: memref<8x1xi32, #tpu.memory_space<vmem>>, %arg3: memref<8x1xf32, #tpu.memory_space<vmem>>, %arg4: memref<8x1xf32, #tpu.memory_space<vmem>>, %arg5: memref<8x1xi32, #tpu.memory_space<vmem>>) attributes {dimension_semantics = [#tpu.dimension_semantics<parallel>], iteration_bounds = array<i64: 3>, scalar_prefetch = 0 : i64, scratch_operands = 0 : i64, tpu.core_type = #tpu.core_type<tc>, window_params = [{transform_indices = @transform_0, window_bounds = array<i64: 8, 16>}, {transform_indices = @transform_1, window_bounds = array<i64: 8, 1>}, {transform_indices = @transform_2, window_bounds = array<i64: 8, 1>}, {transform_indices = @transform_3, window_bounds = array<i64: 8, 1>}, {transform_indices = @transform_4, window_bounds = array<i64: 8, 1>}]} {
    %c0 = arith.constant 0 : index
    %c0_0 = arith.constant 0 : index
    %0 = vector.load %arg1[%c0, %c0_0] : memref<8x16xf32, #tpu.memory_space<vmem>>, vector<8x16xf32>
    %cst = arith.constant dense<0xFF800000> : vector<8xf32>
    %1 = vector.multi_reduction <maximumf>, %0, %cst [1] : vector<8x16xf32> to vector<8xf32>
    %2 = vector.shape_cast %1 : vector<8xf32> to vector<8x1xf32>
    %3 = vector.broadcast %2 : vector<8x1xf32> to vector<8x16xf32>
    %4 = arith.subf %0, %3 : vector<8x16xf32>
    %5 = math.exp %4 : vector<8x16xf32>
    %cst_1 = arith.constant dense<0.000000e+00> : vector<8xf32>
    %6 = vector.multi_reduction <add>, %5, %cst_1 [1] : vector<8x16xf32> to vector<8xf32>
    %7 = vector.shape_cast %6 : vector<8xf32> to vector<8x1xf32>
    %8 = math.log %7 : vector<8x1xf32>
    %9 = vector.broadcast %8 : vector<8x1xf32> to vector<8x16xf32>
    %10 = arith.subf %4, %9 : vector<8x16xf32>
    %11 = vector.broadcast %7 : vector<8x1xf32> to vector<8x16xf32>
    %12 = arith.divf %5, %11 : vector<8x16xf32>
    %c0_2 = arith.constant 0 : index
    %c0_3 = arith.constant 0 : index
    %13 = vector.load %arg2[%c0_2, %c0_3] : memref<8x1xi32, #tpu.memory_space<vmem>>, vector<8x1xi32>
    %14 = tpu.iota {dimensions = array<i32: 1>} : vector<8x16xi32>
    %15 = vector.broadcast %13 : vector<8x1xi32> to vector<8x16xi32>
    %16 = arith.cmpi eq, %14, %15 : vector<8x16xi32>
    %17 = arith.extui %16 : vector<8x16xi1> to vector<8x16xi32>
    %18 = arith.sitofp %17 : vector<8x16xi32> to vector<8x16xf32>
    %19 = arith.mulf %10, %18 : vector<8x16xf32>
    %cst_4 = arith.constant dense<0.000000e+00> : vector<8xf32>
    %20 = vector.multi_reduction <add>, %19, %cst_4 [1] : vector<8x16xf32> to vector<8xf32>
    %21 = vector.shape_cast %20 : vector<8xf32> to vector<8x1xf32>
    %c0_5 = arith.constant 0 : index
    %c0_6 = arith.constant 0 : index
    %22 = vector.load %arg3[%c0_5, %c0_6] : memref<8x1xf32, #tpu.memory_space<vmem>>, vector<8x1xf32>
    tpu.vector_store %arg3[%c0_5, %c0_6], %21 {strides = array<i32>} : memref<8x1xf32, #tpu.memory_space<vmem>>, vector<8x1xf32>,
    %23 = arith.mulf %12, %10 : vector<8x16xf32>
    %cst_7 = arith.constant dense<0.000000e+00> : vector<8xf32>
    %24 = vector.multi_reduction <add>, %23, %cst_7 [1] : vector<8x16xf32> to vector<8xf32>
    %25 = vector.shape_cast %24 : vector<8xf32> to vector<8x1xf32>
    %c0_8 = arith.constant 0 : index
    %c0_9 = arith.constant 0 : index
    %26 = vector.load %arg4[%c0_8, %c0_9] : memref<8x1xf32, #tpu.memory_space<vmem>>, vector<8x1xf32>
    tpu.vector_store %arg4[%c0_8, %c0_9], %25 {strides = array<i32>} : memref<8x1xf32, #tpu.memory_space<vmem>>, vector<8x1xf32>,
    %27 = vector.broadcast %2 : vector<8x1xf32> to vector<8x16xf32>
    %28 = arith.cmpf oeq, %0, %27 : vector<8x16xf32>
    %c16_i32 = arith.constant 16 : i32
    %29 = vector.broadcast %c16_i32 : i32 to vector<8x16xi32>
    %30 = arith.select %28, %14, %29 : vector<8x16xi1>, vector<8x16xi32>
    %cst_10 = arith.constant dense<2147483647> : vector<8xi32>
    %31 = vector.multi_reduction <minsi>, %30, %cst_10 [1] : vector<8x16xi32> to vector<8xi32>
    %32 = vector.shape_cast %31 : vector<8xi32> to vector<8x1xi32>
    %c0_11 = arith.constant 0 : index
    %c0_12 = arith.constant 0 : index
    %33 = vector.load %arg5[%c0_11, %c0_12] : memref<8x1xi32, #tpu.memory_space<vmem>>, vector<8x1xi32>
    tpu.vector_store %arg5[%c0_11, %c0_12], %32 {strides = array<i32>} : memref<8x1xi32, #tpu.memory_space<vmem>>, vector<8x1xi32>,
    return
  }
  func.func @transform_0(%arg0: i32) -> (i32, i32) {
    %c0_i32 = arith.constant 0 : i32
    %c0_i32_0 = arith.constant 0 : i32
    return %arg0, %c0_i32 : i32, i32
  }
  func.func @transform_1(%arg0: i32) -> (i32, i32) {
    %c0_i32 = arith.constant 0 : i32
    %c0_i32_0 = arith.constant 0 : i32
    return %arg0, %c0_i32 : i32, i32
  }
  func.func @transform_2(%arg0: i32) -> (i32, i32) {
    %c0_i32 = arith.constant 0 : i32
    %c0_i32_0 = arith.constant 0 : i32
    return %arg0, %c0_i32 : i32, i32
  }
  func.func @transform_3(%arg0: i32) -> (i32, i32) {
    %c0_i32 = arith.constant 0 : i32
    %c0_i32_0 = arith.constant 0 : i32
    return %arg0, %c0_i32 : i32, i32
  }
  func.func @transform_4(%arg0: i32) -> (i32, i32) {
    %c0_i32 = arith.constant 0 : i32
    %c0_i32_0 = arith.constant 0 : i32
    return %arg0, %c0_i32 : i32, i32
  }
}

</mosaic_0001>

<llo_original>
// kernel: evaluate_actions_and_select.1
$region0: #{evaluate_actions_and_select.1}
  #allocation0 [shape = 'u32[]', space=smem, size = 0x4, offset = 0x4, fixed_abs, tag = 'smem constant byte address 0x4 - core index']
  #allocation1 [shape = 'u32[144,128]{1,0:T(1,128)}', space=vmem, size = 0x12000, scoped, tag = 'internal scratch']
  %s0 = inlined_call_operand.vmem [shape: f32[24,16], index: 0, kind: input, shape index: {}]
  %s1 = inlined_call_operand.vmem [shape: s32[24,1], index: 1, kind: input, shape index: {}]
  %s2 = inlined_call_operand.vmem [shape: f32[24,1], index: 2, kind: output, shape index: {0}]
  %s3 = inlined_call_operand.vmem [shape: f32[24,1], index: 3, kind: output, shape index: {1}]
  %s4 = inlined_call_operand.vmem [shape: s32[24,1], index: 4, kind: output, shape index: {2}]
  %5 = xla_tuple %s2, %s3, %s4
  %s6 = sld [smem:[#allocation0]]
  $region57: #{evaluate_actions_and_select.1} parent=0
    _
  %s8 = ssub.s32 1, %s6
  %s9 = scalar_select 0, %s8, %s6
  loop: start=0, step=1, limit=5
  $region2: #{evaluate_actions_and_select.1} parent=0 // loop_pre_header
    _
  $region3: #{evaluate_actions_and_select.1} parent=0 // loop_header
    %s11 = sphi 0, %s15
    %p12 = scmp.ge.s32.totalorder %s11, 5
    %s21 = sphi 0, %s23
    %s24 = sphi 0, %s21
    %s25 = sphi 0, %s24
    %s41 = sphi 0, %s25
    %s47 = sphi 0, %s49
    %s50 = sphi 0, %s47
    %s51 = sphi 0, %s50
    %s67 = sphi 0, %s51
    %s73 = sphi 0, %s75
    %s76 = sphi 0, %s73
    %s77 = sphi 0, %s76
    %s93 = sphi 0, %s77
    %s99 = sphi 0, %s101
    %s102 = sphi 0, %s99
    %s103 = sphi 0, %s102
    %s119 = sphi 0, %s103
    %s125 = sphi 0, %s127
    %s128 = sphi 0, %s125
    %s129 = sphi 0, %s128
    %s145 = sphi 0, %s129
  $region4: #{evaluate_actions_and_select.1} parent=0 // loop_header_branch
    %14 = sbr.rel (%p12) target = $region8
  $region5: #{evaluate_actions_and_select.1} parent=0 // loop_body
    %s16 = ssub.s32 %s11, 1
    %s17 = ssub.s32 %s11, 2
    %s18 = sadd.s32 %s11, 1
    %s19 = ssub.s32 %s11, %s18
    %p20 = scmp.eq.s32.totalorder %s19, 0
    %s22 = sadd.s32 %s21, 1
    %s23 = scalar_select %p20, %s21, %s22
    %p26 = pneg %p20
    %p27 = scmp.eq.s32.totalorder %s11, 2
    %p28 = por %p26, %p27
    %p29 = scmp.ne.s32.totalorder %s21, %s24
    %p30 = scmp.eq.s32.totalorder %s11, 0
    %p31 = por %p29, %p30
    %p32 = scmp.ne.s32.totalorder %s21, %s24
    %p33 = scmp.eq.s32.totalorder %s16, 2
    %p34 = por %p32, %p33
    %p35 = scmp.ne.s32.totalorder %s24, %s25
    %p36 = scmp.eq.s32.totalorder %s16, 0
    %p37 = por %p35, %p36
    %p38 = scmp.ne.s32.totalorder %s24, %s25
    %p39 = scmp.eq.s32.totalorder %s17, 2
    %p40 = por %p38, %p39
    %p42 = scmp.ne.s32.totalorder %s25, %s41
    %p43 = scmp.eq.s32.totalorder %s17, 0
    %p44 = por %p42, %p43
    %s45 = ssub.s32 %s11, %s18
    %p46 = scmp.eq.s32.totalorder %s45, 0
    %s48 = sadd.s32 %s47, 1
    %s49 = scalar_select %p46, %s47, %s48
    %p52 = pneg %p46
    %p53 = scmp.eq.s32.totalorder %s11, 2
    %p54 = por %p52, %p53
    %p55 = scmp.ne.s32.totalorder %s47, %s50
    %p56 = scmp.eq.s32.totalorder %s11, 0
    %p57 = por %p55, %p56
    %p58 = scmp.ne.s32.totalorder %s47, %s50
    %p59 = scmp.eq.s32.totalorder %s16, 2
    %p60 = por %p58, %p59
    %p61 = scmp.ne.s32.totalorder %s50, %s51
    %p62 = scmp.eq.s32.totalorder %s16, 0
    %p63 = por %p61, %p62
    %p64 = scmp.ne.s32.totalorder %s50, %s51
    %p65 = scmp.eq.s32.totalorder %s17, 2
    %p66 = por %p64, %p65
    %p68 = scmp.ne.s32.totalorder %s51, %s67
    %p69 = scmp.eq.s32.totalorder %s17, 0
    %p70 = por %p68, %p69
    %s71 = ssub.s32 %s11, %s18
    %p72 = scmp.eq.s32.totalorder %s71, 0
    %s74 = sadd.s32 %s73, 1
    %s75 = scalar_select %p72, %s73, %s74
    %p78 = pneg %p72
    %p79 = scmp.eq.s32.totalorder %s11, 2
    %p80 = por %p78, %p79
    %p81 = scmp.ne.s32.totalorder %s73, %s76
    %p82 = scmp.eq.s32.totalorder %s11, 0
    %p83 = por %p81, %p82
    %p84 = scmp.ne.s32.totalorder %s73, %s76
    %p85 = scmp.eq.s32.totalorder %s16, 2
    %p86 = por %p84, %p85
    %p87 = scmp.ne.s32.totalorder %s76, %s77
    %p88 = scmp.eq.s32.totalorder %s16, 0
    %p89 = por %p87, %p88
    %p90 = scmp.ne.s32.totalorder %s76, %s77
    %p91 = scmp.eq.s32.totalorder %s17, 2
    %p92 = por %p90, %p91
    %p94 = scmp.ne.s32.totalorder %s77, %s93
    %p95 = scmp.eq.s32.totalorder %s17, 0
    %p96 = por %p94, %p95
    %s97 = ssub.s32 %s11, %s18
    %p98 = scmp.eq.s32.totalorder %s97, 0
    %s100 = sadd.s32 %s99, 1
    %s101 = scalar_select %p98, %s99, %s100
    %p104 = pneg %p98
    %p105 = scmp.eq.s32.totalorder %s11, 2
    %p106 = por %p104, %p105
    %p107 = scmp.ne.s32.totalorder %s99, %s102
    %p108 = scmp.eq.s32.totalorder %s11, 0
    %p109 = por %p107, %p108
    %p110 = scmp.ne.s32.totalorder %s99, %s102
    %p111 = scmp.eq.s32.totalorder %s16, 2
    %p112 = por %p110, %p111
    %p113 = scmp.ne.s32.totalorder %s102, %s103
    %p114 = scmp.eq.s32.totalorder %s16, 0
    %p115 = por %p113, %p114
    %p116 = scmp.ne.s32.totalorder %s102, %s103
    %p117 = scmp.eq.s32.totalorder %s17, 2
    %p118 = por %p116, %p117
    %p120 = scmp.ne.s32.totalorder %s103, %s119
    %p121 = scmp.eq.s32.totalorder %s17, 0
    %p122 = por %p120, %p121
    %s123 = ssub.s32 %s11, %s18
    %p124 = scmp.eq.s32.totalorder %s123, 0
    %s126 = sadd.s32 %s125, 1
    %s127 = scalar_select %p124, %s125, %s126
    %p130 = pneg %p124
    %p131 = scmp.eq.s32.totalorder %s11, 2
    %p132 = por %p130, %p131
    %p133 = scmp.ne.s32.totalorder %s125, %s128
    %p134 = scmp.eq.s32.totalorder %s11, 0
    %p135 = por %p133, %p134
    %p136 = scmp.ne.s32.totalorder %s125, %s128
    %p137 = scmp.eq.s32.totalorder %s16, 2
    %p138 = por %p136, %p137
    %p139 = scmp.ne.s32.totalorder %s128, %s129
    %p140 = scmp.eq.s32.totalorder %s16, 0
    %p141 = por %p139, %p140
    %p142 = scmp.ne.s32.totalorder %s128, %s129
    %p143 = scmp.eq.s32.totalorder %s17, 2
    %p144 = por %p142, %p143
    %p146 = scmp.ne.s32.totalorder %s129, %s145
    %p147 = scmp.eq.s32.totalorder %s17, 0
    %p148 = por %p146, %p147
    %p149 = scmp.le.s32.totalorder 1, %s11
    %p150 = scmp.lt.s32.totalorder %s11, 4
    %p151 = pnand %p149, %p150
    %p152 = pneg %p151
    // Predicated region
    $region9: #{evaluate_actions_and_select.1} parent=5 // pred_check
      _
    $region10: #{evaluate_actions_and_select.1} parent=5 // pred_check_branch
      %154 = sbr.rel (%p151) target = $region12
    $region11: #{evaluate_actions_and_select.1} parent=5 // pred_region
      %s155 = ssub.s32 %s11, 1
    $region12: #{evaluate_actions_and_select.1} parent=5 // pred_fallthru
      _
    %p156 = scmp.lt.s32.totalorder %s11, 3
    // Predicated region
    $region13: #{evaluate_actions_and_select.1} parent=5 // pred_check
      %p157 = pneg %p156
    $region14: #{evaluate_actions_and_select.1} parent=5 // pred_check_branch
      %159 = sbr.rel (%p157) target = $region16
    $region15: #{evaluate_actions_and_select.1} parent=5 // pred_region
      // Predicated region
      $region17: #{evaluate_actions_and_select.1} parent=15 // pred_check
        %p160 = pneg %p31
      $region18: #{evaluate_actions_and_select.1} parent=15 // pred_check_branch
        %162 = sbr.rel (%p160) target = $region20
      $region19: #{evaluate_actions_and_select.1} parent=15 // pred_region
        %p163 = scmp.lt.s32.totalorder %s11, 2
        %s164 = scalar_select %p163, %s11, 2
        %s165 = smul.addr %s164, 8
        %s166 = scalar_lea.vmem %s0, %s165
      $region20: #{evaluate_actions_and_select.1} parent=15 // pred_fallthru
        _
      // Predicated region
      $region21: #{evaluate_actions_and_select.1} parent=15 // pred_check
        %p167 = pneg %p57
      $region22: #{evaluate_actions_and_select.1} parent=15 // pred_check_branch
        %169 = sbr.rel (%p167) target = $region24
      $region23: #{evaluate_actions_and_select.1} parent=15 // pred_region
        %p170 = scmp.lt.s32.totalorder %s11, 2
        %s171 = scalar_select %p170, %s11, 2
        %s172 = smul.addr %s171, 8
        %s173 = scalar_lea.vmem %s1, %s172
      $region24: #{evaluate_actions_and_select.1} parent=15 // pred_fallthru
        _
    $region16: #{evaluate_actions_and_select.1} parent=5 // pred_fallthru
      _
    %p174 = scmp.le.s32.totalorder 1, %s11
    %p175 = scmp.lt.s32.totalorder %s11, 4
    %p176 = pnand %p174, %p175
    %p177 = pneg %p176
    // Predicated region
    $region25: #{evaluate_actions_and_select.1} parent=5 // pred_check
      _
    $region26: #{evaluate_actions_and_select.1} parent=5 // pred_check_branch
      %179 = sbr.rel (%p176) target = $region28
    $region27: #{evaluate_actions_and_select.1} parent=5 // pred_region
      %s180 = ssub.s32 %s11, 1
      %p181 = scmp.lt.s32.totalorder %s16, 2
      %s182 = scalar_select %p181, %s16, 2
      %s183 = smul.addr %s182, 8
      %s184 = scalar_lea.vmem %s0, %s183
      %p185 = pneg %p37
      %p186 = pneg %p34
      %p187 = scmp.lt.s32.totalorder %s16, 2
      %s188 = scalar_select %p187, %s16, 2
      %s189 = smul.addr %s188, 8
      %s190 = scalar_lea.vmem %s1, %s189
      %p191 = pneg %p63
      %p192 = pneg %p60
      %p193 = pneg %p89
      %p194 = pneg %p86
      %p195 = scmp.lt.s32.totalorder %s16, 2
      %s196 = scalar_select %p195, %s16, 2
      %s197 = smul.addr %s196, 8
      %s198 = scalar_lea.vmem %s2, %s197
      %p199 = pneg %p115
      %p200 = pneg %p112
      %p201 = scmp.lt.s32.totalorder %s16, 2
      %s202 = scalar_select %p201, %s16, 2
      %s203 = smul.addr %s202, 8
      %s204 = scalar_lea.vmem %s3, %s203
      %p205 = pneg %p141
      %p206 = pneg %p138
      %p207 = scmp.lt.s32.totalorder %s16, 2
      %s208 = scalar_select %p207, %s16, 2
      %s209 = smul.addr %s208, 8
      %s210 = scalar_lea.vmem %s4, %s209
      %p211 = scmp.lt.s32.totalorder %s16, 2
      %s212 = scalar_select %p211, %s16, 2
      %s213 = smul.addr %s212, 8
      %s214 = scalar_lea.vmem %s0, %s213
      %p215 = scmp.lt.s32.totalorder %s16, 2
      %s216 = scalar_select %p215, %s16, 2
      %s217 = smul.addr %s216, 8
      %s218 = scalar_lea.vmem %s1, %s217
      %p219 = scmp.lt.s32.totalorder %s16, 2
      %s220 = scalar_select %p219, %s16, 2
      %s221 = smul.addr %s220, 8
      %s222 = scalar_lea.vmem %s2, %s221
      %p223 = scmp.lt.s32.totalorder %s16, 2
      %s224 = scalar_select %p223, %s16, 2
      %s225 = smul.addr %s224, 8
      %s226 = scalar_lea.vmem %s3, %s225
      %p227 = scmp.lt.s32.totalorder %s16, 2
      %s228 = scalar_select %p227, %s16, 2
      %s229 = smul.addr %s228, 8
      %s230 = scalar_lea.vmem %s4, %s229
      %v231 = vld [vmem:[%s214] sm:$0xff]
      %vm232 = vcmask 130048
      %v233 = vsel %vm232, %v231, -inf
      %234 = vmax.xlane.f32.xlu0 %v233
      %v235 = vpop.xlane.xlu0 %234
      %v236 = vsub.f32 %v231, %v235
      %v237 = vmul.f32 %v236, 1.442695
      %v238 = vpow.pop %v237
      %v239 = vsel %vm232, %v238, 0.0
      %240 = vadd.xlane.f32.xlu0 %v239
      %v241 = vpop.xlane.xlu0 %240
      %v242 = vlog2.pop %v241
      %v243 = vmul.f32 %v242, 0.6931472
      %v244 = vsub.f32 %v236, %v243
      %v245 = vrcp.pop %v241
      %v246 = vmul.f32 %v238, %v245
      %v247 = vld [vmem:[%s218] sm:$0xff]
      %v248 = vlaneseq
      %v249 = vand.u32 %v248, 127
      %250 = vset.pattern.permute.xlu0 0
      %251 = vperm.xlu0 %250, %v247
      %v252 = vpop.permute.xlu0 %251
      %vm253 = vcmp.eq.s32.totalorder %v249, %v252
      %v254 = vsel %vm253, 1, 0
      %v255 = vcvt.s32.f32 %v254
      %v256 = vmul.f32 %v244, %v255
      %v257 = vsel %vm232, %v256, 0.0
      %258 = vadd.xlane.f32.xlu0 %v257
      %v259 = vpop.xlane.xlu0 %258
      %vm260 = vcmask 7168
      %261 = vst.msk [vmem:[%s222] sm:$0xff] %vm260, %v259
      %v262 = vmul.f32 %v246, %v244
      %v263 = vsel %vm232, %v262, 0.0
      %264 = vadd.xlane.f32.xlu0 %v263
      %v265 = vpop.xlane.xlu0 %264
      %266 = vst.msk [vmem:[%s226] sm:$0xff] %vm260, %v265
      %vm267 = vcmp.eq.f32.partialorder %v231, %v235
      %v268 = vsel %vm267, %v249, 16
      %v269 = vsel %vm232, %v268, 2147483647
      %v270 = vand.u32 %v269, 65535
      %v271 = vshra.s32 %v269, 16
      %v272 = vcvt.s32.f32 %v270
      %v273 = vcvt.s32.f32 %v271
      %274 = vmin.xlane.f32.xlu0 %v273
      %v275 = vpop.xlane.xlu0 %274
      %vm276 = vcmp.eq.f32.partialorder %v273, %v275
      %v277 = vsel %vm276, %v272, inf
      %278 = vmin.xlane.f32.xlu0 %v277
      %v279 = vpop.xlane.xlu0 %278
      %v280 = vcvt.f32.s32 %v279
      %v281 = vcvt.f32.s32 %v275
      %v282 = vshll.u32 %v281, 16
      %v283 = vadd.s32 %v282, %v280
      %284 = vst.msk [vmem:[%s230] sm:$0xff] %vm260, %v283
      %p285 = scmp.lt.s32.totalorder %s16, 2
      %s286 = scalar_select %p285, %s16, 2
      %s287 = smul.addr %s286, 8
      %s288 = scalar_lea.vmem %s2, %s287
      %p289 = scmp.lt.s32.totalorder %s16, 2
      %s290 = scalar_select %p289, %s16, 2
      %s291 = smul.addr %s290, 8
      %s292 = scalar_lea.vmem %s3, %s291
      %p293 = scmp.lt.s32.totalorder %s16, 2
      %s294 = scalar_select %p293, %s16, 2
      %s295 = smul.addr %s294, 8
      %s296 = scalar_lea.vmem %s4, %s295
      // Predicated region
      $region29: #{evaluate_actions_and_select.1} parent=27 // pred_check
        %p297 = pneg %p86
      $region30: #{evaluate_actions_and_select.1} parent=27 // pred_check_branch
        %299 = sbr.rel (%p297) target = $region32
      $region31: #{evaluate_actions_and_select.1} parent=27 // pred_region
        _
      $region32: #{evaluate_actions_and_select.1} parent=27 // pred_fallthru
        _
      // Predicated region
      $region33: #{evaluate_actions_and_select.1} parent=27 // pred_check
        %p300 = pneg %p112
      $region34: #{evaluate_actions_and_select.1} parent=27 // pred_check_branch
        %302 = sbr.rel (%p300) target = $region36
      $region35: #{evaluate_actions_and_select.1} parent=27 // pred_region
        _
      $region36: #{evaluate_actions_and_select.1} parent=27 // pred_fallthru
        _
      // Predicated region
      $region37: #{evaluate_actions_and_select.1} parent=27 // pred_check
        %p303 = pneg %p138
      $region38: #{evaluate_actions_and_select.1} parent=27 // pred_check_branch
        %305 = sbr.rel (%p303) target = $region40
      $region39: #{evaluate_actions_and_select.1} parent=27 // pred_region
        _
      $region40: #{evaluate_actions_and_select.1} parent=27 // pred_fallthru
        _
    $region28: #{evaluate_actions_and_select.1} parent=5 // pred_fallthru
      _
    %p306 = scmp.le.s32.totalorder 2, %s11
    // Predicated region
    $region41: #{evaluate_actions_and_select.1} parent=5 // pred_check
      %p307 = pneg %p306
    $region42: #{evaluate_actions_and_select.1} parent=5 // pred_check_branch
      %309 = sbr.rel (%p307) target = $region44
    $region43: #{evaluate_actions_and_select.1} parent=5 // pred_region
      %s310 = ssub.s32 %s11, 2
      // Predicated region
      $region45: #{evaluate_actions_and_select.1} parent=43 // pred_check
        %p311 = pneg %p92
      $region46: #{evaluate_actions_and_select.1} parent=43 // pred_check_branch
        %313 = sbr.rel (%p311) target = $region48
      $region47: #{evaluate_actions_and_select.1} parent=43 // pred_region
        %p314 = scmp.lt.s32.totalorder %s17, 2
        %s315 = scalar_select %p314, %s17, 2
        %s316 = smul.addr %s315, 8
        %s317 = scalar_lea.vmem %s2, %s316
      $region48: #{evaluate_actions_and_select.1} parent=43 // pred_fallthru
        _
      // Predicated region
      $region49: #{evaluate_actions_and_select.1} parent=43 // pred_check
        %p318 = pneg %p118
      $region50: #{evaluate_actions_and_select.1} parent=43 // pred_check_branch
        %320 = sbr.rel (%p318) target = $region52
      $region51: #{evaluate_actions_and_select.1} parent=43 // pred_region
        %p321 = scmp.lt.s32.totalorder %s17, 2
        %s322 = scalar_select %p321, %s17, 2
        %s323 = smul.addr %s322, 8
        %s324 = scalar_lea.vmem %s3, %s323
      $region52: #{evaluate_actions_and_select.1} parent=43 // pred_fallthru
        _
      // Predicated region
      $region53: #{evaluate_actions_and_select.1} parent=43 // pred_check
        %p325 = pneg %p144
      $region54: #{evaluate_actions_and_select.1} parent=43 // pred_check_branch
        %327 = sbr.rel (%p325) target = $region56
      $region55: #{evaluate_actions_and_select.1} parent=43 // pred_region
        %p328 = scmp.lt.s32.totalorder %s17, 2
        %s329 = scalar_select %p328, %s17, 2
        %s330 = smul.addr %s329, 8
        %s331 = scalar_lea.vmem %s4, %s330
      $region56: #{evaluate_actions_and_select.1} parent=43 // pred_fallthru
        _
    $region44: #{evaluate_actions_and_select.1} parent=5 // pred_fallthru
      _
  $region6: #{evaluate_actions_and_select.1} parent=0 // loop_footer
    %s15 = sadd.s32 1, %s11
  $region7: #{evaluate_actions_and_select.1} parent=0 // loop_footer_branch
    %10 = sbr.rel target = $region3
  $region8: #{evaluate_actions_and_select.1} parent=0 // loop_exit
    _

</llo_original>
